<compile_context>
chip_gen: v6e
topology: v6e:2x2x1
jax: 0.10.0
libtpu: 0.0.40
codegen_flags: <defaults>
</compile_context>

<pallas_src>
import jax
import jax.numpy as jnp
from jax.experimental import pallas as pl
from jax.experimental.pallas import tpu as pltpu


def mlp_kernel(x_ref, w1_ref, b1_ref, w2_ref, b2_ref,
               w3_ref, b3_ref, w4_ref, b4_ref, o_ref):
    # x_ref: (2, TN) batch-on-lanes tile; all weights fully resident in VMEM.
    x = x_ref[...]                                  # (2, TN)
    w1 = w1_ref[...]                                # (20, 2)
    # Layer 1 has K=2: two broadcast FMAs on the VPU beat a (mostly idle) MXU pass.
    h = jnp.tanh(w1[:, 0:1] * x[0:1, :] + w1[:, 1:2] * x[1:2, :] + b1_ref[...])
    # Middle layers: (20,20) @ (20,TN) -> (20,TN), lane dim = batch = large N.
    h = jnp.tanh(jnp.dot(w2_ref[...], h, preferred_element_type=jnp.float32)
                 + b2_ref[...])
    h = jnp.tanh(jnp.dot(w3_ref[...], h, preferred_element_type=jnp.float32)
                 + b3_ref[...])
    # Output layer: (1,20) @ (20,TN) -> (1,TN), lane-dense store.
    y = jnp.dot(w4_ref[...], h, preferred_element_type=jnp.float32) + b4_ref[...]
    o_ref[...] = y.astype(o_ref.dtype)


def _round_up(n, m):
    return ((n + m - 1) // m) * m


def inference_net(x, params, *, tile_n=8192):
    """x: (N, 2) float32 -> (N, 1) float32. Any N (padded to the tile)."""
    N, Fin = x.shape
    assert Fin == 2
    w1, b1, w2, b2, w3, b3, w4, b4 = params

    # Big batch tiles (fewer ~600-cycle grid steps), capped at the 128-rounded
    # batch size. Keep >=2 grid steps when possible so v7x's two TensorCores
    # both get work via the "parallel" grid axis. Compute stays f32 (v5e-safe,
    # and keeps the 1e-5 tolerance vs. the reference).
    tile = min(_round_up(tile_n, 128), _round_up(N, 128))
    if _round_up(N, tile) // tile < 2 and tile > 128:
        tile = max(128, _round_up(tile // 2, 128))
    n_total = _round_up(N, tile)
    grid_n = n_total // tile

    if n_total != N:
        x = jnp.pad(x, ((0, n_total - N), (0, 0)))
    xt = x.T                                        # (2, n_total)

    def full(arr):
        shape = arr.shape
        return pl.BlockSpec(shape, lambda i: (0,) * len(shape))

    flops = 2 * n_total * (2 * 20 + 20 * 20 + 20 * 20 + 20 * 1)
    bytes_accessed = 4 * (n_total * 2 + n_total * 1) + sum(4 * p.size for p in params)

    out = pl.pallas_call(
        mlp_kernel,
        out_shape=jax.ShapeDtypeStruct((1, n_total), jnp.float32),
        grid_spec=pltpu.PrefetchScalarGridSpec(
            num_scalar_prefetch=0,
            grid=(grid_n,),
            in_specs=[
                pl.BlockSpec((2, tile), lambda i: (0, i)),   # x tile (batch on lanes)
                full(w1), full(b1),
                full(w2), full(b2),
                full(w3), full(b3),
                full(w4), full(b4),
            ],
            out_specs=pl.BlockSpec((1, tile), lambda i: (0, i)),
        ),
        compiler_params=pltpu.CompilerParams(
            dimension_semantics=("parallel",)),
        cost_estimate=pl.CostEstimate(
            flops=flops,
            transcendentals=60 * n_total,
            bytes_accessed=bytes_accessed),
    )(xt, w1, b1, w2, b2, w3, b3, w4, b4)

    # Back to PyTorch's (N, 1) output shape; drop padded columns.
    return out[0, :N].reshape(N, 1)


def init_params(key):
    """Deterministic synthetic params in PyTorch orientation: W (out,in), b (out,1)."""
    dims = [(2, 20), (20, 20), (20, 20), (20, 1)]
    params = []
    for idx, (din, dout) in enumerate(dims):
        kw, kb = jax.random.split(jax.random.fold_in(key, idx))
        bound = 1.0 / jnp.sqrt(din)
        w = jax.random.uniform(kw, (dout, din), jnp.float32, -bound, bound)
        b = jax.random.uniform(kb, (dout, 1), jnp.float32, -bound, bound)
        params += [w, b]
    return tuple(params)


def reference(x, params):
    w1, b1, w2, b2, w3, b3, w4, b4 = params
    h = jnp.tanh(x @ w1.T + b1.T)
    h = jnp.tanh(h @ w2.T + b2.T)
    h = jnp.tanh(h @ w3.T + b3.T)
    return h @ w4.T + b4.T


if __name__ == "__main__":
    key = jax.random.PRNGKey(0)
    params = init_params(key)
    x = jax.random.normal(jax.random.fold_in(key, 99), (256, 2), jnp.float32)

    out = inference_net(x, params)
    out = jax.block_until_ready(out)

    ref = reference(x, params)
    assert out.shape == (256, 1)
    assert jnp.allclose(out, ref, atol=1e-5, rtol=1e-5)
    print("KERNEL_OK")
</pallas_src>

<mosaic_0001>
module attributes {stable_mosaic.version = 11 : i64} {
  func.func @mlp_kernel(%arg0: i32, %arg1: memref<2x128xf32, #tpu.memory_space<vmem>>, %arg2: memref<20x2xf32, #tpu.memory_space<vmem>>, %arg3: memref<20x1xf32, #tpu.memory_space<vmem>>, %arg4: memref<20x20xf32, #tpu.memory_space<vmem>>, %arg5: memref<20x1xf32, #tpu.memory_space<vmem>>, %arg6: memref<20x20xf32, #tpu.memory_space<vmem>>, %arg7: memref<20x1xf32, #tpu.memory_space<vmem>>, %arg8: memref<1x20xf32, #tpu.memory_space<vmem>>, %arg9: memref<1x1xf32, #tpu.memory_space<vmem>>, %arg10: memref<1x128xf32, #tpu.memory_space<vmem>>) attributes {dimension_semantics = [#tpu.dimension_semantics<parallel>], iteration_bounds = array<i64: 2>, scalar_prefetch = 0 : i64, scratch_operands = 0 : i64, tpu.core_type = #tpu.core_type<tc>, window_params = [{transform_indices = @transform_0, window_bounds = array<i64: 2, 128>}, {pipeline_mode = #tpu.pipeline_mode<synchronous>, transform_indices = @transform_1, window_bounds = array<i64: 20, 2>}, {pipeline_mode = #tpu.pipeline_mode<synchronous>, transform_indices = @transform_2, window_bounds = array<i64: 20, 1>}, {pipeline_mode = #tpu.pipeline_mode<synchronous>, transform_indices = @transform_3, window_bounds = array<i64: 20, 20>}, {pipeline_mode = #tpu.pipeline_mode<synchronous>, transform_indices = @transform_4, window_bounds = array<i64: 20, 1>}, {pipeline_mode = #tpu.pipeline_mode<synchronous>, transform_indices = @transform_5, window_bounds = array<i64: 20, 20>}, {pipeline_mode = #tpu.pipeline_mode<synchronous>, transform_indices = @transform_6, window_bounds = array<i64: 20, 1>}, {pipeline_mode = #tpu.pipeline_mode<synchronous>, transform_indices = @transform_7, window_bounds = array<i64: 1, 20>}, {pipeline_mode = #tpu.pipeline_mode<synchronous>, transform_indices = @transform_8, window_bounds = array<i64: 1, 1>}, {transform_indices = @transform_9, window_bounds = array<i64: 1, 128>}]} {
    %c0 = arith.constant 0 : index
    %c0_0 = arith.constant 0 : index
    %0 = vector.load %arg1[%c0, %c0_0] : memref<2x128xf32, #tpu.memory_space<vmem>>, vector<2x128xf32>
    %c0_1 = arith.constant 0 : index
    %c0_2 = arith.constant 0 : index
    %1 = vector.load %arg2[%c0_1, %c0_2] : memref<20x2xf32, #tpu.memory_space<vmem>>, vector<20x2xf32>
    %2 = vector.extract_strided_slice %1 {offsets = [0, 0], sizes = [20, 1], strides = [1, 1]} : vector<20x2xf32> to vector<20x1xf32>
    %3 = vector.extract_strided_slice %0 {offsets = [0, 0], sizes = [1, 128], strides = [1, 1]} : vector<2x128xf32> to vector<1x128xf32>
    %4 = vector.broadcast %2 : vector<20x1xf32> to vector<20x128xf32>
    %5 = vector.broadcast %3 : vector<1x128xf32> to vector<20x128xf32>
    %6 = arith.mulf %4, %5 : vector<20x128xf32>
    %7 = vector.extract_strided_slice %1 {offsets = [0, 1], sizes = [20, 1], strides = [1, 1]} : vector<20x2xf32> to vector<20x1xf32>
    %8 = vector.extract_strided_slice %0 {offsets = [1, 0], sizes = [1, 128], strides = [1, 1]} : vector<2x128xf32> to vector<1x128xf32>
    %9 = vector.broadcast %7 : vector<20x1xf32> to vector<20x128xf32>
    %10 = vector.broadcast %8 : vector<1x128xf32> to vector<20x128xf32>
    %11 = arith.mulf %9, %10 : vector<20x128xf32>
    %12 = arith.addf %6, %11 : vector<20x128xf32>
    %c0_3 = arith.constant 0 : index
    %c0_4 = arith.constant 0 : index
    %13 = vector.load %arg3[%c0_3, %c0_4] : memref<20x1xf32, #tpu.memory_space<vmem>>, vector<20x1xf32>
    %14 = vector.broadcast %13 : vector<20x1xf32> to vector<20x128xf32>
    %15 = arith.addf %12, %14 : vector<20x128xf32>
    %16 = math.tanh %15 : vector<20x128xf32>
    %c0_5 = arith.constant 0 : index
    %c0_6 = arith.constant 0 : index
    %17 = vector.load %arg4[%c0_5, %c0_6] : memref<20x20xf32, #tpu.memory_space<vmem>>, vector<20x20xf32>
    %cst = arith.constant dense<0.000000e+00> : vector<20x128xf32>
    %18 = tpu.matmul %17, %16, %cst {dimension_numbers = #tpu.dot_dimension_numbers<[1], [0], [0], [1], [0, 0, 1, 1], [], []>} : vector<20x20xf32>, vector<20x128xf32>, vector<20x128xf32> -> vector<20x128xf32>
    %c0_7 = arith.constant 0 : index
    %c0_8 = arith.constant 0 : index
    %19 = vector.load %arg5[%c0_7, %c0_8] : memref<20x1xf32, #tpu.memory_space<vmem>>, vector<20x1xf32>
    %20 = vector.broadcast %19 : vector<20x1xf32> to vector<20x128xf32>
    %21 = arith.addf %18, %20 : vector<20x128xf32>
    %22 = math.tanh %21 : vector<20x128xf32>
    %c0_9 = arith.constant 0 : index
    %c0_10 = arith.constant 0 : index
    %23 = vector.load %arg6[%c0_9, %c0_10] : memref<20x20xf32, #tpu.memory_space<vmem>>, vector<20x20xf32>
    %cst_11 = arith.constant dense<0.000000e+00> : vector<20x128xf32>
    %24 = tpu.matmul %23, %22, %cst_11 {dimension_numbers = #tpu.dot_dimension_numbers<[1], [0], [0], [1], [0, 0, 1, 1], [], []>} : vector<20x20xf32>, vector<20x128xf32>, vector<20x128xf32> -> vector<20x128xf32>
    %c0_12 = arith.constant 0 : index
    %c0_13 = arith.constant 0 : index
    %25 = vector.load %arg7[%c0_12, %c0_13] : memref<20x1xf32, #tpu.memory_space<vmem>>, vector<20x1xf32>
    %26 = vector.broadcast %25 : vector<20x1xf32> to vector<20x128xf32>
    %27 = arith.addf %24, %26 : vector<20x128xf32>
    %28 = math.tanh %27 : vector<20x128xf32>
    %c0_14 = arith.constant 0 : index
    %c0_15 = arith.constant 0 : index
    %29 = vector.load %arg8[%c0_14, %c0_15] : memref<1x20xf32, #tpu.memory_space<vmem>>, vector<1x20xf32>
    %cst_16 = arith.constant dense<0.000000e+00> : vector<1x128xf32>
    %30 = tpu.matmul %29, %28, %cst_16 {dimension_numbers = #tpu.dot_dimension_numbers<[1], [0], [0], [1], [0, 0, 1, 1], [], []>} : vector<1x20xf32>, vector<20x128xf32>, vector<1x128xf32> -> vector<1x128xf32>
    %c0_17 = arith.constant 0 : index
    %c0_18 = arith.constant 0 : index
    %31 = vector.load %arg9[%c0_17, %c0_18] : memref<1x1xf32, #tpu.memory_space<vmem>>, vector<1x1xf32>
    %32 = vector.broadcast %31 : vector<1x1xf32> to vector<1x128xf32>
    %33 = arith.addf %30, %32 : vector<1x128xf32>
    %c0_19 = arith.constant 0 : index
    %c0_20 = arith.constant 0 : index
    %34 = vector.load %arg10[%c0_19, %c0_20] : memref<1x128xf32, #tpu.memory_space<vmem>>, vector<1x128xf32>
    tpu.vector_store %arg10[%c0_19, %c0_20], %33 {strides = array<i32>} : memref<1x128xf32, #tpu.memory_space<vmem>>, vector<1x128xf32>,
    return
  }
  func.func @transform_0(%arg0: i32) -> (i32, i32) {
    %c0_i32 = arith.constant 0 : i32
    %c0_i32_0 = arith.constant 0 : i32
    return %c0_i32, %arg0 : i32, i32
  }
  func.func @transform_1(%arg0: i32) -> (i32, i32) {
    %c0_i32 = arith.constant 0 : i32
    %c0_i32_0 = arith.constant 0 : i32
    %c0_i32_1 = arith.constant 0 : i32
    return %c0_i32, %c0_i32_0 : i32, i32
  }
  func.func @transform_2(%arg0: i32) -> (i32, i32) {
    %c0_i32 = arith.constant 0 : i32
    %c0_i32_0 = arith.constant 0 : i32
    %c0_i32_1 = arith.constant 0 : i32
    return %c0_i32, %c0_i32_0 : i32, i32
  }
  func.func @transform_3(%arg0: i32) -> (i32, i32) {
    %c0_i32 = arith.constant 0 : i32
    %c0_i32_0 = arith.constant 0 : i32
    %c0_i32_1 = arith.constant 0 : i32
    return %c0_i32, %c0_i32_0 : i32, i32
  }
  func.func @transform_4(%arg0: i32) -> (i32, i32) {
    %c0_i32 = arith.constant 0 : i32
    %c0_i32_0 = arith.constant 0 : i32
    %c0_i32_1 = arith.constant 0 : i32
    return %c0_i32, %c0_i32_0 : i32, i32
  }
  func.func @transform_5(%arg0: i32) -> (i32, i32) {
    %c0_i32 = arith.constant 0 : i32
    %c0_i32_0 = arith.constant 0 : i32
    %c0_i32_1 = arith.constant 0 : i32
    return %c0_i32, %c0_i32_0 : i32, i32
  }
  func.func @transform_6(%arg0: i32) -> (i32, i32) {
    %c0_i32 = arith.constant 0 : i32
    %c0_i32_0 = arith.constant 0 : i32
    %c0_i32_1 = arith.constant 0 : i32
    return %c0_i32, %c0_i32_0 : i32, i32
  }
  func.func @transform_7(%arg0: i32) -> (i32, i32) {
    %c0_i32 = arith.constant 0 : i32
    %c0_i32_0 = arith.constant 0 : i32
    %c0_i32_1 = arith.constant 0 : i32
    return %c0_i32, %c0_i32_0 : i32, i32
  }
  func.func @transform_8(%arg0: i32) -> (i32, i32) {
    %c0_i32 = arith.constant 0 : i32
    %c0_i32_0 = arith.constant 0 : i32
    %c0_i32_1 = arith.constant 0 : i32
    return %c0_i32, %c0_i32_0 : i32, i32
  }
  func.func @transform_9(%arg0: i32) -> (i32, i32) {
    %c0_i32 = arith.constant 0 : i32
    %c0_i32_0 = arith.constant 0 : i32
    return %c0_i32, %arg0 : i32, i32
  }
}

</mosaic_0001>

<llo_original>
// kernel: tpu_custom_call.1
$region0: #{tpu_custom_call.1}
  #allocation0 [shape = 'u32[]', space=smem, size = 0x4, offset = 0x4, fixed_abs, tag = 'smem constant byte address 0x4 - core index']
  #allocation1 [shape = 'u32[144,128]{1,0:T(1,128)}', space=vmem, size = 0x12000, scoped, tag = 'internal scratch']
  #allocation2 [shape = 'f32[1,1]{1,0:T(1,128)S(1)}', space=vmem, size = 0x200, scoped, tag = 'scoped memory for tpu_custom_call.1']
  %s0 = inlined_call_operand.vmem [shape: f32[2,256], index: 0, kind: input, shape index: {}]
  %s1 = inlined_call_operand.vmem [shape: f32[20,2], index: 1, kind: input, shape index: {}]
  %s2 = inlined_call_operand.vmem [shape: f32[20,1], index: 2, kind: input, shape index: {}]
  %s3 = inlined_call_operand.vmem [shape: f32[20,20], index: 3, kind: input, shape index: {}]
  %s4 = inlined_call_operand.vmem [shape: f32[20,1], index: 4, kind: input, shape index: {}]
  %s5 = inlined_call_operand.vmem [shape: f32[20,20], index: 5, kind: input, shape index: {}]
  %s6 = inlined_call_operand.vmem [shape: f32[20,1], index: 6, kind: input, shape index: {}]
  %s7 = inlined_call_operand.vmem [shape: f32[1,20], index: 7, kind: input, shape index: {}]
  %s8 = inlined_call_operand.<no memory space> [shape: f32[1,1], index: 8, kind: input, shape index: {}]
  %s9 = inlined_call_operand.hbm [shape: f32[1,256], index: 9, kind: output, shape index: {}]
  %s10 = sld [smem:[#allocation0]]
  $region69: #{tpu_custom_call.1} parent=0
    _
  %s12 = ssub.s32 1, %s10
  %s13 = scalar_select 0, %s12, %s10
  %v14 = vstv %s8
  %15 = vst [vmem:[#allocation2] sm:$0x1] %v14
  $region1: #{tpu_custom_call.1} parent=0
    #allocation3 [shape = 'u8[1024]{0}', space=vmem, size = 0x400, scoped, tag = 'output window, operand 0']
    #allocation4 [shape = 's32[2]{0}', space=sflag, size = 0x8, scoped, tag = 'scoped memory for tpu_custom_call.1']
    %16 = vsyncpa [#allocation4], 0
    %s17 = scalar_lea.sflag [#allocation4], 1
    %18 = vsyncpa %s17, 0
    loop: start=0, step=1, limit=4
    $region2: #{tpu_custom_call.1} parent=1 // loop_pre_header
      _
    $region3: #{tpu_custom_call.1} parent=1 // loop_header
      %s20 = sphi 0, %s24
      %p21 = scmp.ge.s32.totalorder %s20, 4
      %s30 = sphi 0, %s32
      %s33 = sphi 0, %s30
      %s34 = sphi 0, %s33
      %s50 = sphi 0, %s34
      %s54 = sphi 0, %s54
      %s56 = sphi 0, %s54
      %s57 = sphi 0, %s56
      %s71 = sphi 0, %s57
      %s75 = sphi 0, %s75
      %s77 = sphi 0, %s75
      %s78 = sphi 0, %s77
      %s92 = sphi 0, %s78
      %s96 = sphi 0, %s96
      %s98 = sphi 0, %s96
      %s99 = sphi 0, %s98
      %s113 = sphi 0, %s99
      %s117 = sphi 0, %s117
      %s119 = sphi 0, %s117
      %s120 = sphi 0, %s119
      %s134 = sphi 0, %s120
      %s138 = sphi 0, %s138
      %s140 = sphi 0, %s138
      %s141 = sphi 0, %s140
      %s155 = sphi 0, %s141
      %s159 = sphi 0, %s159
      %s161 = sphi 0, %s159
      %s162 = sphi 0, %s161
      %s176 = sphi 0, %s162
      %s180 = sphi 0, %s180
      %s182 = sphi 0, %s180
      %s183 = sphi 0, %s182
      %s197 = sphi 0, %s183
      %s201 = sphi 0, %s201
      %s203 = sphi 0, %s201
      %s204 = sphi 0, %s203
      %s218 = sphi 0, %s204
      %s224 = sphi 0, %s226
      %s227 = sphi 0, %s224
      %s228 = sphi 0, %s227
      %s244 = sphi 0, %s228
    $region4: #{tpu_custom_call.1} parent=1 // loop_header_branch
      %23 = sbr.rel (%p21) target = $region8
    $region5: #{tpu_custom_call.1} parent=1 // loop_body
      %s25 = ssub.s32 %s20, 1
      %s26 = ssub.s32 %s20, 2
      %s27 = sadd.s32 %s20, 1
      %s28 = ssub.s32 %s20, %s27
      %p29 = scmp.eq.s32.totalorder %s28, 0
      %s31 = sadd.s32 %s30, 1
      %s32 = scalar_select %p29, %s30, %s31
      %p35 = pneg %p29
      %p36 = scmp.eq.s32.totalorder %s20, 1
      %p37 = por %p35, %p36
      %p38 = scmp.ne.s32.totalorder %s30, %s33
      %p39 = scmp.eq.s32.totalorder %s20, 0
      %p40 = por %p38, %p39
      %p41 = scmp.ne.s32.totalorder %s30, %s33
      %p42 = scmp.eq.s32.totalorder %s25, 1
      %p43 = por %p41, %p42
      %p44 = scmp.ne.s32.totalorder %s33, %s34
      %p45 = scmp.eq.s32.totalorder %s25, 0
      %p46 = por %p44, %p45
      %p47 = scmp.ne.s32.totalorder %s33, %s34
      %p48 = scmp.eq.s32.totalorder %s26, 1
      %p49 = por %p47, %p48
      %p51 = scmp.ne.s32.totalorder %s34, %s50
      %p52 = scmp.eq.s32.totalorder %s26, 0
      %p53 = por %p51, %p52
      %s55 = sadd.s32 %s54, 1
      %p58 = scmp.eq.s32.totalorder %s20, 1
      %p59 = scmp.ne.s32.totalorder %s54, %s56
      %p60 = scmp.eq.s32.totalorder %s20, 0
      %p61 = por %p59, %p60
      %p62 = scmp.ne.s32.totalorder %s54, %s56
      %p63 = scmp.eq.s32.totalorder %s25, 1
      %p64 = por %p62, %p63
      %p65 = scmp.ne.s32.totalorder %s56, %s57
      %p66 = scmp.eq.s32.totalorder %s25, 0
      %p67 = por %p65, %p66
      %p68 = scmp.ne.s32.totalorder %s56, %s57
      %p69 = scmp.eq.s32.totalorder %s26, 1
      %p70 = por %p68, %p69
      %p72 = scmp.ne.s32.totalorder %s57, %s71
      %p73 = scmp.eq.s32.totalorder %s26, 0
      %p74 = por %p72, %p73
      %s76 = sadd.s32 %s75, 1
      %p79 = scmp.eq.s32.totalorder %s20, 1
      %p80 = scmp.ne.s32.totalorder %s75, %s77
      %p81 = scmp.eq.s32.totalorder %s20, 0
      %p82 = por %p80, %p81
      %p83 = scmp.ne.s32.totalorder %s75, %s77
      %p84 = scmp.eq.s32.totalorder %s25, 1
      %p85 = por %p83, %p84
      %p86 = scmp.ne.s32.totalorder %s77, %s78
      %p87 = scmp.eq.s32.totalorder %s25, 0
      %p88 = por %p86, %p87
      %p89 = scmp.ne.s32.totalorder %s77, %s78
      %p90 = scmp.eq.s32.totalorder %s26, 1
      %p91 = por %p89, %p90
      %p93 = scmp.ne.s32.totalorder %s78, %s92
      %p94 = scmp.eq.s32.totalorder %s26, 0
      %p95 = por %p93, %p94
      %s97 = sadd.s32 %s96, 1
      %p100 = scmp.eq.s32.totalorder %s20, 1
      %p101 = scmp.ne.s32.totalorder %s96, %s98
      %p102 = scmp.eq.s32.totalorder %s20, 0
      %p103 = por %p101, %p102
      %p104 = scmp.ne.s32.totalorder %s96, %s98
      %p105 = scmp.eq.s32.totalorder %s25, 1
      %p106 = por %p104, %p105
      %p107 = scmp.ne.s32.totalorder %s98, %s99
      %p108 = scmp.eq.s32.totalorder %s25, 0
      %p109 = por %p107, %p108
      %p110 = scmp.ne.s32.totalorder %s98, %s99
      %p111 = scmp.eq.s32.totalorder %s26, 1
      %p112 = por %p110, %p111
      %p114 = scmp.ne.s32.totalorder %s99, %s113
      %p115 = scmp.eq.s32.totalorder %s26, 0
      %p116 = por %p114, %p115
      %s118 = sadd.s32 %s117, 1
      %p121 = scmp.eq.s32.totalorder %s20, 1
      %p122 = scmp.ne.s32.totalorder %s117, %s119
      %p123 = scmp.eq.s32.totalorder %s20, 0
      %p124 = por %p122, %p123
      %p125 = scmp.ne.s32.totalorder %s117, %s119
      %p126 = scmp.eq.s32.totalorder %s25, 1
      %p127 = por %p125, %p126
      %p128 = scmp.ne.s32.totalorder %s119, %s120
      %p129 = scmp.eq.s32.totalorder %s25, 0
      %p130 = por %p128, %p129
      %p131 = scmp.ne.s32.totalorder %s119, %s120
      %p132 = scmp.eq.s32.totalorder %s26, 1
      %p133 = por %p131, %p132
      %p135 = scmp.ne.s32.totalorder %s120, %s134
      %p136 = scmp.eq.s32.totalorder %s26, 0
      %p137 = por %p135, %p136
      %s139 = sadd.s32 %s138, 1
      %p142 = scmp.eq.s32.totalorder %s20, 1
      %p143 = scmp.ne.s32.totalorder %s138, %s140
      %p144 = scmp.eq.s32.totalorder %s20, 0
      %p145 = por %p143, %p144
      %p146 = scmp.ne.s32.totalorder %s138, %s140
      %p147 = scmp.eq.s32.totalorder %s25, 1
      %p148 = por %p146, %p147
      %p149 = scmp.ne.s32.totalorder %s140, %s141
      %p150 = scmp.eq.s32.totalorder %s25, 0
      %p151 = por %p149, %p150
      %p152 = scmp.ne.s32.totalorder %s140, %s141
      %p153 = scmp.eq.s32.totalorder %s26, 1
      %p154 = por %p152, %p153
      %p156 = scmp.ne.s32.totalorder %s141, %s155
      %p157 = scmp.eq.s32.totalorder %s26, 0
      %p158 = por %p156, %p157
      %s160 = sadd.s32 %s159, 1
      %p163 = scmp.eq.s32.totalorder %s20, 1
      %p164 = scmp.ne.s32.totalorder %s159, %s161
      %p165 = scmp.eq.s32.totalorder %s20, 0
      %p166 = por %p164, %p165
      %p167 = scmp.ne.s32.totalorder %s159, %s161
      %p168 = scmp.eq.s32.totalorder %s25, 1
      %p169 = por %p167, %p168
      %p170 = scmp.ne.s32.totalorder %s161, %s162
      %p171 = scmp.eq.s32.totalorder %s25, 0
      %p172 = por %p170, %p171
      %p173 = scmp.ne.s32.totalorder %s161, %s162
      %p174 = scmp.eq.s32.totalorder %s26, 1
      %p175 = por %p173, %p174
      %p177 = scmp.ne.s32.totalorder %s162, %s176
      %p178 = scmp.eq.s32.totalorder %s26, 0
      %p179 = por %p177, %p178
      %s181 = sadd.s32 %s180, 1
      %p184 = scmp.eq.s32.totalorder %s20, 1
      %p185 = scmp.ne.s32.totalorder %s180, %s182
      %p186 = scmp.eq.s32.totalorder %s20, 0
      %p187 = por %p185, %p186
      %p188 = scmp.ne.s32.totalorder %s180, %s182
      %p189 = scmp.eq.s32.totalorder %s25, 1
      %p190 = por %p188, %p189
      %p191 = scmp.ne.s32.totalorder %s182, %s183
      %p192 = scmp.eq.s32.totalorder %s25, 0
      %p193 = por %p191, %p192
      %p194 = scmp.ne.s32.totalorder %s182, %s183
      %p195 = scmp.eq.s32.totalorder %s26, 1
      %p196 = por %p194, %p195
      %p198 = scmp.ne.s32.totalorder %s183, %s197
      %p199 = scmp.eq.s32.totalorder %s26, 0
      %p200 = por %p198, %p199
      %s202 = sadd.s32 %s201, 1
      %p205 = scmp.eq.s32.totalorder %s20, 1
      %p206 = scmp.ne.s32.totalorder %s201, %s203
      %p207 = scmp.eq.s32.totalorder %s20, 0
      %p208 = por %p206, %p207
      %p209 = scmp.ne.s32.totalorder %s201, %s203
      %p210 = scmp.eq.s32.totalorder %s25, 1
      %p211 = por %p209, %p210
      %p212 = scmp.ne.s32.totalorder %s203, %s204
      %p213 = scmp.eq.s32.totalorder %s25, 0
      %p214 = por %p212, %p213
      %p215 = scmp.ne.s32.totalorder %s203, %s204
      %p216 = scmp.eq.s32.totalorder %s26, 1
      %p217 = por %p215, %p216
      %p219 = scmp.ne.s32.totalorder %s204, %s218
      %p220 = scmp.eq.s32.totalorder %s26, 0
      %p221 = por %p219, %p220
      %s222 = ssub.s32 %s20, %s27
      %p223 = scmp.eq.s32.totalorder %s222, 0
      %s225 = sadd.s32 %s224, 1
      %s226 = scalar_select %p223, %s224, %s225
      %p229 = pneg %p223
      %p230 = scmp.eq.s32.totalorder %s20, 1
      %p231 = por %p229, %p230
      %p232 = scmp.ne.s32.totalorder %s224, %s227
      %p233 = scmp.eq.s32.totalorder %s20, 0
      %p234 = por %p232, %p233
      %p235 = scmp.ne.s32.totalorder %s224, %s227
      %p236 = scmp.eq.s32.totalorder %s25, 1
      %p237 = por %p235, %p236
      %p238 = scmp.ne.s32.totalorder %s227, %s228
      %p239 = scmp.eq.s32.totalorder %s25, 0
      %p240 = por %p238, %p239
      %p241 = scmp.ne.s32.totalorder %s227, %s228
      %p242 = scmp.eq.s32.totalorder %s26, 1
      %p243 = por %p241, %p242
      %p245 = scmp.ne.s32.totalorder %s228, %s244
      %p246 = scmp.eq.s32.totalorder %s26, 0
      %p247 = por %p245, %p246
      %p248 = scmp.le.s32.totalorder 1, %s20
      %p249 = scmp.lt.s32.totalorder %s20, 3
      %p250 = pnand %p248, %p249
      %p251 = pneg %p250
      // Predicated region
      $region9: #{tpu_custom_call.1} parent=5 // pred_check
        _
      $region10: #{tpu_custom_call.1} parent=5 // pred_check_branch
        %253 = sbr.rel (%p250) target = $region12
      $region11: #{tpu_custom_call.1} parent=5 // pred_region
        %s254 = ssub.s32 %s20, 1
        // Predicated region
        $region13: #{tpu_custom_call.1} parent=11 // pred_check
          %p255 = pneg %p67
        $region14: #{tpu_custom_call.1} parent=11 // pred_check_branch
          %257 = sbr.rel (%p255) target = $region16
        $region15: #{tpu_custom_call.1} parent=11 // pred_region
          _
        $region16: #{tpu_custom_call.1} parent=11 // pred_fallthru
          _
        // Predicated region
        $region17: #{tpu_custom_call.1} parent=11 // pred_check
          %p258 = pneg %p88
        $region18: #{tpu_custom_call.1} parent=11 // pred_check_branch
          %260 = sbr.rel (%p258) target = $region20
        $region19: #{tpu_custom_call.1} parent=11 // pred_region
          _
        $region20: #{tpu_custom_call.1} parent=11 // pred_fallthru
          _
        // Predicated region
        $region21: #{tpu_custom_call.1} parent=11 // pred_check
          %p261 = pneg %p109
        $region22: #{tpu_custom_call.1} parent=11 // pred_check_branch
          %263 = sbr.rel (%p261) target = $region24
        $region23: #{tpu_custom_call.1} parent=11 // pred_region
          _
        $region24: #{tpu_custom_call.1} parent=11 // pred_fallthru
          _
        // Predicated region
        $region25: #{tpu_custom_call.1} parent=11 // pred_check
          %p264 = pneg %p130
        $region26: #{tpu_custom_call.1} parent=11 // pred_check_branch
          %266 = sbr.rel (%p264) target = $region28
        $region27: #{tpu_custom_call.1} parent=11 // pred_region
          _
        $region28: #{tpu_custom_call.1} parent=11 // pred_fallthru
          _
        // Predicated region
        $region29: #{tpu_custom_call.1} parent=11 // pred_check
          %p267 = pneg %p151
        $region30: #{tpu_custom_call.1} parent=11 // pred_check_branch
          %269 = sbr.rel (%p267) target = $region32
        $region31: #{tpu_custom_call.1} parent=11 // pred_region
          _
        $region32: #{tpu_custom_call.1} parent=11 // pred_fallthru
          _
        // Predicated region
        $region33: #{tpu_custom_call.1} parent=11 // pred_check
          %p270 = pneg %p172
        $region34: #{tpu_custom_call.1} parent=11 // pred_check_branch
          %272 = sbr.rel (%p270) target = $region36
        $region35: #{tpu_custom_call.1} parent=11 // pred_region
          _
        $region36: #{tpu_custom_call.1} parent=11 // pred_fallthru
          _
        // Predicated region
        $region37: #{tpu_custom_call.1} parent=11 // pred_check
          %p273 = pneg %p193
        $region38: #{tpu_custom_call.1} parent=11 // pred_check_branch
          %275 = sbr.rel (%p273) target = $region40
        $region39: #{tpu_custom_call.1} parent=11 // pred_region
          _
        $region40: #{tpu_custom_call.1} parent=11 // pred_fallthru
          _
        // Predicated region
        $region41: #{tpu_custom_call.1} parent=11 // pred_check
          %p276 = pneg %p214
        $region42: #{tpu_custom_call.1} parent=11 // pred_check_branch
          %278 = sbr.rel (%p276) target = $region44
        $region43: #{tpu_custom_call.1} parent=11 // pred_region
          _
        $region44: #{tpu_custom_call.1} parent=11 // pred_fallthru
          _
      $region12: #{tpu_custom_call.1} parent=5 // pred_fallthru
        _
      %p279 = scmp.lt.s32.totalorder %s20, 2
      // Predicated region
      $region45: #{tpu_custom_call.1} parent=5 // pred_check
        %p280 = pneg %p279
      $region46: #{tpu_custom_call.1} parent=5 // pred_check_branch
        %282 = sbr.rel (%p280) target = $region48
      $region47: #{tpu_custom_call.1} parent=5 // pred_region
        // Predicated region
        $region49: #{tpu_custom_call.1} parent=47 // pred_check
          %p283 = pneg %p40
        $region50: #{tpu_custom_call.1} parent=47 // pred_check_branch
          %285 = sbr.rel (%p283) target = $region52
        $region51: #{tpu_custom_call.1} parent=47 // pred_region
          %p286 = scmp.lt.s32.totalorder %s20, 1
          %s287 = scalar_select %p286, %s20, 1
          %s288 = smul.addr %s287, 2
          %s289 = scalar_lea.vmem %s0, %s288
        $region52: #{tpu_custom_call.1} parent=47 // pred_fallthru
          _
      $region48: #{tpu_custom_call.1} parent=5 // pred_fallthru
        _
      %p290 = scmp.le.s32.totalorder 1, %s20
      %p291 = scmp.lt.s32.totalorder %s20, 3
      %p292 = pnand %p290, %p291
      %p293 = pneg %p292
      // Predicated region
      $region53: #{tpu_custom_call.1} parent=5 // pred_check
        _
      $region54: #{tpu_custom_call.1} parent=5 // pred_check_branch
        %295 = sbr.rel (%p292) target = $region56
      $region55: #{tpu_custom_call.1} parent=5 // pred_region
        %s296 = ssub.s32 %s20, 1
        %p297 = scmp.lt.s32.totalorder %s25, 1
        %s298 = scalar_select %p297, %s25, 1
        %s299 = smul.addr %s298, 2
        %s300 = scalar_lea.vmem %s0, %s299
        %p301 = pneg %p46
        %p302 = pneg %p43
        %p303 = pneg %p67
        %p304 = pneg %p64
        %p305 = pneg %p88
        %p306 = pneg %p85
        %p307 = pneg %p109
        %p308 = pneg %p106
        %p309 = pneg %p130
        %p310 = pneg %p127
        %p311 = pneg %p151
        %p312 = pneg %p148
        %p313 = pneg %p172
        %p314 = pneg %p169
        %p315 = pneg %p193
        %p316 = pneg %p190
        %p317 = pneg %p214
        %p318 = pneg %p211
        %p319 = pneg %p240
        %p320 = pneg %p237
        %s321 = sand.u32 %s227, 1
        %s322 = scalar_lea.sflag [#allocation4], %s321
        %s323 = sand.u32 %s227, 1
        %s324 = scalar_lea.vmem [#allocation3], %s323
        %p325 = scmp.lt.s32.totalorder %s25, 1
        %s326 = scalar_select %p325, %s25, 1
        %s327 = smul.addr %s326, 2
        %s328 = scalar_lea.vmem %s0, %s327
        %v329 = vld [vmem:[%s328] sm:$0x3]
        %v330 = vld [vmem:[%s1] sm:$0xff]
        %v331 = vld [vmem:[%s1 + $0x8] sm:$0xff]
        %v332 = vld [vmem:[%s1 + $0x10] sm:$0xf]
        %334 = vset.pattern.permute.xlu0 0
        %335 = vperm.xlu0 %334, %v330
        %v336 = vpop.permute.xlu0 %335
        %339 = vset.pattern.permute.xlu0 0
        %340 = vperm.xlu0 %339, %v331
        %v341 = vpop.permute.xlu0 %340
        %344 = vset.pattern.permute.xlu0 0
        %345 = vperm.xlu0 %344, %v332
        %v346 = vpop.permute.xlu0 %345
        %v348 = vlaneseq
        %v349 = vshrl.u32 %v348, 7
        %v350 = vsub.s32 0, %v349
        %v351 = vrot.slane %v329, %v350
        %v352 = vmul.f32 %v336, %v351
        %v353 = vmul.f32 %v341, %v351
        %v354 = vmul.f32 %v346, %v351
        %355 = vset.pattern.permute.xlu0 1
        %356 = vperm.xlu0 %355, %v330
        %v357 = vpop.permute.xlu0 %356
        %359 = vset.pattern.permute.xlu0 1
        %360 = vperm.xlu0 %359, %v331
        %v361 = vpop.permute.xlu0 %360
        %363 = vset.pattern.permute.xlu0 1
        %364 = vperm.xlu0 %363, %v332
        %v365 = vpop.permute.xlu0 %364
        %v367 = vlaneseq
        %v368 = vshrl.u32 %v367, 7
        %v369 = vsub.s32 1, %v368
        %v370 = vrot.slane %v329, %v369
        %v371 = vmul.f32 %v357, %v370
        %v372 = vmul.f32 %v361, %v370
        %v373 = vmul.f32 %v365, %v370
        %v374 = vadd.f32 %v352, %v371
        %v375 = vadd.f32 %v353, %v372
        %v376 = vadd.f32 %v354, %v373
        %v377 = vld [vmem:[%s2] sm:$0xff]
        %v378 = vld [vmem:[%s2 + $0x8] sm:$0xff]
        %v379 = vld [vmem:[%s2 + $0x10] sm:$0xf]
        %381 = vset.pattern.permute.xlu0 0
        %382 = vperm.xlu0 %381, %v377
        %v383 = vpop.permute.xlu0 %382
        %386 = vset.pattern.permute.xlu0 0
        %387 = vperm.xlu0 %386, %v378
        %v388 = vpop.permute.xlu0 %387
        %391 = vset.pattern.permute.xlu0 0
        %392 = vperm.xlu0 %391, %v379
        %v393 = vpop.permute.xlu0 %392
        %v395 = vadd.f32 %v374, %v383
        %v396 = vadd.f32 %v375, %v388
        %v397 = vadd.f32 %v376, %v393
        %v398 = vtanh.pop %v395
        %v399 = vtanh.pop %v396
        %v400 = vtanh.pop %v397
        %v401 = vld [vmem:[%s3] sm:$0xff]
        %v402 = vld [vmem:[%s3 + $0x8] sm:$0xff]
        %v403 = vld [vmem:[%s3 + $0x10] sm:$0xf]
        %v404 = vld [vmem:[%s4] sm:$0xff]
        %v405 = vld [vmem:[%s4 + $0x8] sm:$0xff]
        %v406 = vld [vmem:[%s4 + $0x10] sm:$0xf]
        %408 = vset.pattern.permute.xlu0 0
        %409 = vperm.xlu0 %408, %v404
        %v410 = vpop.permute.xlu0 %409
        %413 = vset.pattern.permute.xlu0 0
        %414 = vperm.xlu0 %413, %v405
        %v415 = vpop.permute.xlu0 %414
        %418 = vset.pattern.permute.xlu0 0
        %419 = vperm.xlu0 %418, %v406
        %v420 = vpop.permute.xlu0 %419
        %vm422 = vcmask 162816
        %v424 = vsel %vm422, %v401, 0
        %v427 = vsel %vm422, %v402, 0
        %v430 = vsel %vm422, %v403, 0
        %vm432 = vcmask 1043456
        %v434 = vsel %vm432, %v400, 0
        %436 = vmatprep.subr.mxu0 0.0
        %437 = vmatpush1.msra.mxu0 0.0
        %438 = vmatprep.subr.mxu0 0.0
        %439 = vmatpush1.msra.mxu0 0.0
        %440 = vmatprep.subr.mxu0 0.0
        %441 = vmatpush1.msra.mxu0 0.0
        %442 = vmatprep.subr.mxu0 0.0
        %443 = vmatpush1.msra.mxu0 0.0
        %444 = vmatprep.subr.mxu0 0.0
        %445 = vmatpush1.msra.mxu0 0.0
        %446 = vmatprep.subr.mxu0 0.0
        %447 = vmatpush1.msra.mxu0 0.0
        %448 = vmatprep.subr.mxu0 0.0
        %449 = vmatpush1.msra.mxu0 0.0
        %450 = vmatprep.subr.mxu0 0.0
        %451 = vmatpush1.msra.mxu0 0.0
        %452 = vmatprep.subr.mxu0 0.0
        %453 = vmatpush1.msra.mxu0 0.0
        %454 = vmatprep.subr.mxu0 0.0
        %455 = vmatpush1.msra.mxu0 0.0
        %456 = vmatprep.subr.mxu0 0.0
        %457 = vmatpush1.msra.mxu0 0.0
        %458 = vmatprep.subr.mxu0 0.0
        %459 = vmatpush1.msra.mxu0 0.0
        %460 = vmatprep.subr.mxu0 0.0
        %461 = vmatpush1.msra.mxu0 0.0
        %462 = vmatprep.subr.mxu0 0.0
        %463 = vmatpush1.msra.mxu0 %v434
        %464 = vmatprep.subr.mxu0 0.0
        %465 = vmatpush1.msra.mxu0 %v399
        %466 = vmatprep.subr.mxu0 0.0
        %467 = vmatpush1.msra.mxu0 %v398
        %468 = vmatprep.subr.mxu0 0.0
        %469 = vmatpush2.msra.mxu0 0.0
        %470 = vmatprep.subr.mxu0 0.0
        %471 = vmatpush2.msra.mxu0 0.0
        %472 = vmatprep.subr.mxu0 0.0
        %473 = vmatpush2.msra.mxu0 0.0
        %474 = vmatprep.subr.mxu0 0.0
        %475 = vmatpush2.msra.mxu0 0.0
        %476 = vmatprep.subr.mxu0 0.0
        %477 = vmatpush2.msra.mxu0 0.0
        %478 = vmatprep.subr.mxu0 0.0
        %479 = vmatpush2.msra.mxu0 0.0
        %480 = vmatprep.subr.mxu0 0.0
        %481 = vmatpush2.msra.mxu0 0.0
        %482 = vmatprep.subr.mxu0 0.0
        %483 = vmatpush2.msra.mxu0 0.0
        %484 = vmatprep.subr.mxu0 0.0
        %485 = vmatpush2.msra.mxu0 0.0
        %486 = vmatprep.subr.mxu0 0.0
        %487 = vmatpush2.msra.mxu0 0.0
        %488 = vmatprep.subr.mxu0 0.0
        %489 = vmatpush2.msra.mxu0 0.0
        %490 = vmatprep.subr.mxu0 0.0
        %491 = vmatpush2.msra.mxu0 0.0
        %492 = vmatprep.subr.mxu0 0.0
        %493 = vmatpush2.msra.mxu0 0.0
        %494 = vmatprep.subr.mxu0 0.0
        %495 = vmatpush2.msra.mxu0 0.0
        %496 = vmatprep.subr.mxu0 0.0
        %497 = vmatpush2.msra.mxu0 0.0
        %498 = vmatprep.subr.mxu0 0.0
        %499 = vmatpush2.msra.mxu0 0.0
        %500 = vmatprep.mubr.f32.mxu0 0.0
        %501 = vmatmul.mubr.f32.gmra.mxu0 %v424
        %v502 = vpop.f32.mrf.mxu0
        %v503 = vadd.f32 %v410, %v502
        %v504 = vpop.f32.mrf.mxu0
        %505 = vmatprep.mubr.f32.mxu0 0.0
        %506 = vmatmul.mubr.f32.gmra.mxu0 %v427
        %v507 = vpop.f32.mrf.mxu0
        %v508 = vadd.f32 %v415, %v507
        %v509 = vpop.f32.mrf.mxu0
        %510 = vmatprep.mubr.f32.mxu0 0.0
        %511 = vmatmul.mubr.f32.gmra.mxu0 %v430
        %v512 = vpop.f32.mrf.mxu0
        %v513 = vadd.f32 %v420, %v512
        %v514 = vpop.f32.mrf.mxu0
        %515 = vdwg.mxu0
        %v516 = vtanh.pop %v503
        %v517 = vtanh.pop %v508
        %v518 = vtanh.pop %v513
        %v519 = vld [vmem:[%s5] sm:$0xff]
        %v520 = vld [vmem:[%s5 + $0x8] sm:$0xff]
        %v521 = vld [vmem:[%s5 + $0x10] sm:$0xf]
        %v522 = vld [vmem:[%s6] sm:$0xff]
        %v523 = vld [vmem:[%s6 + $0x8] sm:$0xff]
        %v524 = vld [vmem:[%s6 + $0x10] sm:$0xf]
        %526 = vset.pattern.permute.xlu0 0
        %527 = vperm.xlu0 %526, %v522
        %v528 = vpop.permute.xlu0 %527
        %531 = vset.pattern.permute.xlu0 0
        %532 = vperm.xlu0 %531, %v523
        %v533 = vpop.permute.xlu0 %532
        %536 = vset.pattern.permute.xlu0 0
        %537 = vperm.xlu0 %536, %v524
        %v538 = vpop.permute.xlu0 %537
        %v541 = vsel %vm422, %v519, 0
        %v544 = vsel %vm422, %v520, 0
        %v547 = vsel %vm422, %v521, 0
        %v550 = vsel %vm432, %v518, 0
        %552 = vmatprep.subr.mxu0 0.0
        %553 = vmatpush1.msra.mxu0 0.0
        %554 = vmatprep.subr.mxu0 0.0
        %555 = vmatpush1.msra.mxu0 0.0
        %556 = vmatprep.subr.mxu0 0.0
        %557 = vmatpush1.msra.mxu0 0.0
        %558 = vmatprep.subr.mxu0 0.0
        %559 = vmatpush1.msra.mxu0 0.0
        %560 = vmatprep.subr.mxu0 0.0
        %561 = vmatpush1.msra.mxu0 0.0
        %562 = vmatprep.subr.mxu0 0.0
        %563 = vmatpush1.msra.mxu0 0.0
        %564 = vmatprep.subr.mxu0 0.0
        %565 = vmatpush1.msra.mxu0 0.0
        %566 = vmatprep.subr.mxu0 0.0
        %567 = vmatpush1.msra.mxu0 0.0
        %568 = vmatprep.subr.mxu0 0.0
        %569 = vmatpush1.msra.mxu0 0.0
        %570 = vmatprep.subr.mxu0 0.0
        %571 = vmatpush1.msra.mxu0 0.0
        %572 = vmatprep.subr.mxu0 0.0
        %573 = vmatpush1.msra.mxu0 0.0
        %574 = vmatprep.subr.mxu0 0.0
        %575 = vmatpush1.msra.mxu0 0.0
        %576 = vmatprep.subr.mxu0 0.0
        %577 = vmatpush1.msra.mxu0 0.0
        %578 = vmatprep.subr.mxu0 0.0
        %579 = vmatpush1.msra.mxu0 %v550
        %580 = vmatprep.subr.mxu0 0.0
        %581 = vmatpush1.msra.mxu0 %v517
        %582 = vmatprep.subr.mxu0 0.0
        %583 = vmatpush1.msra.mxu0 %v516
        %584 = vmatprep.subr.mxu0 0.0
        %585 = vmatpush2.msra.mxu0 0.0
        %586 = vmatprep.subr.mxu0 0.0
        %587 = vmatpush2.msra.mxu0 0.0
        %588 = vmatprep.subr.mxu0 0.0
        %589 = vmatpush2.msra.mxu0 0.0
        %590 = vmatprep.subr.mxu0 0.0
        %591 = vmatpush2.msra.mxu0 0.0
        %592 = vmatprep.subr.mxu0 0.0
        %593 = vmatpush2.msra.mxu0 0.0
        %594 = vmatprep.subr.mxu0 0.0
        %595 = vmatpush2.msra.mxu0 0.0
        %596 = vmatprep.subr.mxu0 0.0
        %597 = vmatpush2.msra.mxu0 0.0
        %598 = vmatprep.subr.mxu0 0.0
        %599 = vmatpush2.msra.mxu0 0.0
        %600 = vmatprep.subr.mxu0 0.0
        %601 = vmatpush2.msra.mxu0 0.0
        %602 = vmatprep.subr.mxu0 0.0
        %603 = vmatpush2.msra.mxu0 0.0
        %604 = vmatprep.subr.mxu0 0.0
        %605 = vmatpush2.msra.mxu0 0.0
        %606 = vmatprep.subr.mxu0 0.0
        %607 = vmatpush2.msra.mxu0 0.0
        %608 = vmatprep.subr.mxu0 0.0
        %609 = vmatpush2.msra.mxu0 0.0
        %610 = vmatprep.subr.mxu0 0.0
        %611 = vmatpush2.msra.mxu0 0.0
        %612 = vmatprep.subr.mxu0 0.0
        %613 = vmatpush2.msra.mxu0 0.0
        %614 = vmatprep.subr.mxu0 0.0
        %615 = vmatpush2.msra.mxu0 0.0
        %616 = vmatprep.mubr.f32.mxu0 0.0
        %617 = vmatmul.mubr.f32.gmra.mxu0 %v541
        %v618 = vpop.f32.mrf.mxu0
        %v619 = vadd.f32 %v528, %v618
        %v620 = vpop.f32.mrf.mxu0
        %621 = vmatprep.mubr.f32.mxu0 0.0
        %622 = vmatmul.mubr.f32.gmra.mxu0 %v544
        %v623 = vpop.f32.mrf.mxu0
        %v624 = vadd.f32 %v533, %v623
        %v625 = vpop.f32.mrf.mxu0
        %626 = vmatprep.mubr.f32.mxu0 0.0
        %627 = vmatmul.mubr.f32.gmra.mxu0 %v547
        %v628 = vpop.f32.mrf.mxu0
        %v629 = vadd.f32 %v538, %v628
        %v630 = vpop.f32.mrf.mxu0
        %631 = vdwg.mxu0
        %v632 = vtanh.pop %v619
        %v633 = vtanh.pop %v624
        %v634 = vtanh.pop %v629
        %v635 = vld [vmem:[%s7] sm:$0x1]
        %v636 = vld [vmem:[#allocation2] sm:$0x1]
        %638 = vset.pattern.permute.xlu0 0
        %639 = vperm.xlu0 %638, %v636
        %v640 = vpop.permute.xlu0 %639
        %v642 = vlaneseq
        %v643 = vshrl.u32 %v642, 7
        %v644 = vsub.s32 0, %v643
        %v645 = vrot.slane %v640, %v644
        %v647 = vsel %vm422, %v635, 0
        %v650 = vsel %vm432, %v634, 0
        %652 = vmatprep.subr.mxu0 0.0
        %653 = vmatpush1.msra.mxu0 0.0
        %654 = vmatprep.subr.mxu0 0.0
        %655 = vmatpush1.msra.mxu0 0.0
        %656 = vmatprep.subr.mxu0 0.0
        %657 = vmatpush1.msra.mxu0 0.0
        %658 = vmatprep.subr.mxu0 0.0
        %659 = vmatpush1.msra.mxu0 0.0
        %660 = vmatprep.subr.mxu0 0.0
        %661 = vmatpush1.msra.mxu0 0.0
        %662 = vmatprep.subr.mxu0 0.0
        %663 = vmatpush1.msra.mxu0 0.0
        %664 = vmatprep.subr.mxu0 0.0
        %665 = vmatpush1.msra.mxu0 0.0
        %666 = vmatprep.subr.mxu0 0.0
        %667 = vmatpush1.msra.mxu0 0.0
        %668 = vmatprep.subr.mxu0 0.0
        %669 = vmatpush1.msra.mxu0 0.0
        %670 = vmatprep.subr.mxu0 0.0
        %671 = vmatpush1.msra.mxu0 0.0
        %672 = vmatprep.subr.mxu0 0.0
        %673 = vmatpush1.msra.mxu0 0.0
        %674 = vmatprep.subr.mxu0 0.0
        %675 = vmatpush1.msra.mxu0 0.0
        %676 = vmatprep.subr.mxu0 0.0
        %677 = vmatpush1.msra.mxu0 0.0
        %678 = vmatprep.subr.mxu0 0.0
        %679 = vmatpush1.msra.mxu0 %v650
        %680 = vmatprep.subr.mxu0 0.0
        %681 = vmatpush1.msra.mxu0 %v633
        %682 = vmatprep.subr.mxu0 0.0
        %683 = vmatpush1.msra.mxu0 %v632
        %684 = vmatprep.subr.mxu0 0.0
        %685 = vmatpush2.msra.mxu0 0.0
        %686 = vmatprep.subr.mxu0 0.0
        %687 = vmatpush2.msra.mxu0 0.0
        %688 = vmatprep.subr.mxu0 0.0
        %689 = vmatpush2.msra.mxu0 0.0
        %690 = vmatprep.subr.mxu0 0.0
        %691 = vmatpush2.msra.mxu0 0.0
        %692 = vmatprep.subr.mxu0 0.0
        %693 = vmatpush2.msra.mxu0 0.0
        %694 = vmatprep.subr.mxu0 0.0
        %695 = vmatpush2.msra.mxu0 0.0
        %696 = vmatprep.subr.mxu0 0.0
        %697 = vmatpush2.msra.mxu0 0.0
        %698 = vmatprep.subr.mxu0 0.0
        %699 = vmatpush2.msra.mxu0 0.0
        %700 = vmatprep.subr.mxu0 0.0
        %701 = vmatpush2.msra.mxu0 0.0
        %702 = vmatprep.subr.mxu0 0.0
        %703 = vmatpush2.msra.mxu0 0.0
        %704 = vmatprep.subr.mxu0 0.0
        %705 = vmatpush2.msra.mxu0 0.0
        %706 = vmatprep.subr.mxu0 0.0
        %707 = vmatpush2.msra.mxu0 0.0
        %708 = vmatprep.subr.mxu0 0.0
        %709 = vmatpush2.msra.mxu0 0.0
        %710 = vmatprep.subr.mxu0 0.0
        %711 = vmatpush2.msra.mxu0 0.0
        %712 = vmatprep.subr.mxu0 0.0
        %713 = vmatpush2.msra.mxu0 0.0
        %714 = vmatprep.subr.mxu0 0.0
        %715 = vmatpush2.msra.mxu0 0.0
        %716 = vmatprep.mubr.f32.mxu0 0.0
        %717 = vmatmul.mubr.f32.gmra.mxu0 %v647
        %v718 = vpop.f32.mrf.mxu0
        %v719 = vadd.f32 %v645, %v718
        %v720 = vpop.f32.mrf.mxu0
        %721 = vdwg.mxu0
        %722 = vst [vmem:[%s324] sm:$0x1] %v719
        %s723 = sand.u32 %s227, 1
        %s724 = scalar_lea.sflag [#allocation4], %s723
        %s725 = sand.u32 %s227, 1
        %s726 = scalar_lea.vmem [#allocation3], %s725
        // Predicated region
        $region57: #{tpu_custom_call.1} parent=55 // pred_check
          %p727 = pneg %p237
        $region58: #{tpu_custom_call.1} parent=55 // pred_check_branch
          %729 = sbr.rel (%p727) target = $region60
        $region59: #{tpu_custom_call.1} parent=55 // pred_region
          %s731 = ssub.s32 16, 16
          %732 = vsyncadd %s724, %s731
          %s733 = smul.addr %s25, 16
          %s734 = scalar_lea.hbm %s9, %s733
          %s736 = sshll.u32 %s726, 4
          %s737 = int_to_ptr.vmem [resolvable:$true] %s736
          %739 = dma.vmem_to_hbm [thread:$0]  %s737, 16, %s734, %s724
        $region60: #{tpu_custom_call.1} parent=55 // pred_fallthru
          _
      $region56: #{tpu_custom_call.1} parent=5 // pred_fallthru
        _
      %p740 = scmp.le.s32.totalorder 2, %s20
      // Predicated region
      $region61: #{tpu_custom_call.1} parent=5 // pred_check
        %p741 = pneg %p740
      $region62: #{tpu_custom_call.1} parent=5 // pred_check_branch
        %743 = sbr.rel (%p741) target = $region64
      $region63: #{tpu_custom_call.1} parent=5 // pred_region
        %s744 = ssub.s32 %s20, 2
        // Predicated region
        $region65: #{tpu_custom_call.1} parent=63 // pred_check
          %p745 = pneg %p243
        $region66: #{tpu_custom_call.1} parent=63 // pred_check_branch
          %747 = sbr.rel (%p745) target = $region68
        $region67: #{tpu_custom_call.1} parent=63 // pred_region
          %s748 = sand.u32 %s228, 1
          %s749 = scalar_lea.sflag [#allocation4], %s748
          %s750 = sand.u32 %s228, 1
          %s751 = scalar_lea.vmem [#allocation3], %s750
          %752 = dma.done %s749, 16
        $region68: #{tpu_custom_call.1} parent=63 // pred_fallthru
          _
      $region64: #{tpu_custom_call.1} parent=5 // pred_fallthru
        _
    $region6: #{tpu_custom_call.1} parent=1 // loop_footer
      %s24 = sadd.s32 1, %s20
    $region7: #{tpu_custom_call.1} parent=1 // loop_footer_branch
      %19 = sbr.rel target = $region3
    $region8: #{tpu_custom_call.1} parent=1 // loop_exit
      _
    %753 = vsyncpa [#allocation4], 1
    %s754 = scalar_lea.sflag [#allocation4], 1
    %755 = vsyncpa %s754, 1

</llo_original>
